<compile_context>
chip_gen: v7x
topology: tpu7x:2x2x1
jax: 0.10.0
libtpu: 0.0.40
codegen_flags: <defaults>
</compile_context>

<pallas_src>
import math

import jax
import jax.numpy as jnp
from jax.experimental import pallas as pl
from jax.experimental.pallas import tpu as pltpu

LANE = 128     # lane width (last dim)
SUBLANE = 8    # sublane width (second-to-last dim)


def _round_up(x: int, m: int) -> int:
    return (x + m - 1) // m * m


def _make_decoder_kernel(n_layers: int, hid_dim: int, in_dims: tuple):
    """in_dims[l] = input width of layer l (output_dim for l=0, else hid_dim)."""
    H = hid_dim

    def kernel(*refs):
        # inputs : x, h_in, c_in, [w_stacked_l, b_l] * n_layers, w_fc, b_fc
        # outputs: pred, h_out, c_out
        x_ref, h_ref, c_ref = refs[0], refs[1], refs[2]
        layer_refs = refs[3:3 + 2 * n_layers]
        w_fc_ref, b_fc_ref = refs[3 + 2 * n_layers], refs[4 + 2 * n_layers]
        pred_ref, h_out_ref, c_out_ref = refs[-3], refs[-2], refs[-1]

        x = x_ref[...]                                   # (BP, in_dims[0]), f32
        for l in range(n_layers):
            in_dim = in_dims[l]
            w = layer_refs[2 * l][...]                   # (in_dim + H, HG) bf16
            b = layer_refs[2 * l + 1][...]               # (1, HG) f32
            h_prev = h_ref[l]                            # (BP, H) f32
            c_prev = c_ref[l]                            # (BP, H) f32

            # Stacked weight: rows [0:in_dim] = W_ih^T, rows [in_dim:] = W_hh^T.
            # Two small MXU dots (K=in_dim / K=H), f32 accumulation.
            gates = (jnp.dot(x.astype(jnp.bfloat16), w[:in_dim, :],
                             preferred_element_type=jnp.float32)
                     + jnp.dot(h_prev.astype(jnp.bfloat16), w[in_dim:, :],
                               preferred_element_type=jnp.float32)
                     + b)

            # Gate block is packed contiguously in [0, 4H); slices are cheap lane selects.
            i_g = jax.nn.sigmoid(gates[:, 0 * H:1 * H])
            f_g = jax.nn.sigmoid(gates[:, 1 * H:2 * H])
            g_g = jnp.tanh(gates[:, 2 * H:3 * H])
            o_g = jax.nn.sigmoid(gates[:, 3 * H:4 * H])

            c_new = f_g * c_prev + i_g * g_g
            h_new = o_g * jnp.tanh(c_new)

            h_out_ref[l] = h_new
            c_out_ref[l] = c_new
            x = h_new  # inter-layer dropout is identity (eval mode)

        pred_ref[...] = (jnp.dot(x.astype(jnp.bfloat16), w_fc_ref[...],
                                 preferred_element_type=jnp.float32)
                         + b_fc_ref[...])

    return kernel


def pack_decoder_params(raw, output_dim, hid_dim, n_layers, weight_dtype=jnp.bfloat16):
    """Stack [W_ih^T; W_hh^T] per layer; pad only the 4H gate block (as a whole) to 128 lanes.

    Weights are stored in bf16 (halves HBM traffic); biases stay f32.
    """
    H = hid_dim
    HG = _round_up(4 * H, LANE)          # gate block padded as a whole, not per gate
    packed = {}
    for l in range(n_layers):
        in_dim = output_dim if l == 0 else H
        w_ih = raw[f"w_ih_{l}"]                       # (4H, in_dim), gate order i,f,g,o
        w_hh = raw[f"w_hh_{l}"]                       # (4H, H)
        b = raw[f"b_ih_{l}"] + raw[f"b_hh_{l}"]       # (4H,)

        w = jnp.zeros((in_dim + H, HG), jnp.float32)
        w = w.at[:in_dim, :4 * H].set(w_ih.T)
        w = w.at[in_dim:, :4 * H].set(w_hh.T)
        b_p = jnp.zeros((1, HG), jnp.float32).at[0, :4 * H].set(b)

        packed[f"w_{l}"] = w.astype(weight_dtype)
        packed[f"b_{l}"] = b_p
    packed["w_fc"] = raw["w_fc"].T.astype(weight_dtype)           # (H, output_dim)
    packed["b_fc"] = raw["b_fc"].reshape(1, output_dim).astype(jnp.float32)
    return packed


def decoder_forward_padded(packed, x_p, h_p, c_p, output_dim, hid_dim, n_layers):
    """Hot path: state already in batch-padded layout.

    x_p: (bp, output_dim) f32; h_p/c_p: (n_layers, bp, hid_dim) f32, bp multiple of 8.
    Returns (pred_p, h_out_p, c_out_p) in the same padded layout (h/c aliased in place).
    """
    bp = x_p.shape[0]
    in_dims = tuple(output_dim if l == 0 else hid_dim for l in range(n_layers))

    flat_inputs = [x_p, h_p, c_p]
    for l in range(n_layers):
        flat_inputs += [packed[f"w_{l}"], packed[f"b_{l}"]]
    flat_inputs += [packed["w_fc"], packed["b_fc"]]

    vmem = pl.BlockSpec(memory_space=pltpu.MemorySpace.VMEM)
    out_shape = (
        jax.ShapeDtypeStruct((bp, output_dim), jnp.float32),            # prediction
        jax.ShapeDtypeStruct((n_layers, bp, hid_dim), jnp.float32),     # hidden
        jax.ShapeDtypeStruct((n_layers, bp, hid_dim), jnp.float32),     # cell
    )

    # VMEM footprint guard (v5e scoped default is 16 MiB; v7x physical is 64 MiB).
    total_bytes = sum(int(a.size) * a.dtype.itemsize for a in flat_inputs)
    total_bytes += sum(math.prod(s.shape) * jnp.dtype(s.dtype).itemsize for s in out_shape)
    vmem_limit = min(64 * 1024 * 1024, max(32 * 1024 * 1024, int(1.5 * total_bytes)))

    kernel = _make_decoder_kernel(n_layers, hid_dim, in_dims)
    pred_p, h_out_p, c_out_p = pl.pallas_call(
        kernel,
        out_shape=out_shape,
        in_specs=[vmem] * len(flat_inputs),
        out_specs=(vmem, vmem, vmem),
        input_output_aliases={1: 1, 2: 2},   # update h/c in place
        compiler_params=pltpu.CompilerParams(vmem_limit_bytes=vmem_limit),
    )(*flat_inputs)
    return pred_p, h_out_p, c_out_p


def decoder_forward(packed, inp, hidden, cell):
    """Boundary convenience: pad batch to 8 sublanes, run one step, unpad.

    For autoregressive decode, keep state in the padded layout and call
    decoder_forward_padded directly (pad once per sequence, not per step).
    """
    batch, output_dim = inp.shape
    n_layers, _, hid_dim = hidden.shape
    bp = _round_up(max(batch, SUBLANE), SUBLANE)

    if bp == batch:
        x_p = inp.astype(jnp.float32)
        h_p = hidden.astype(jnp.float32)
        c_p = cell.astype(jnp.float32)
    else:
        x_p = jnp.zeros((bp, output_dim), jnp.float32).at[:batch].set(inp)
        h_p = jnp.zeros((n_layers, bp, hid_dim), jnp.float32).at[:, :batch].set(hidden)
        c_p = jnp.zeros((n_layers, bp, hid_dim), jnp.float32).at[:, :batch].set(cell)

    pred_p, h_out_p, c_out_p = decoder_forward_padded(
        packed, x_p, h_p, c_p, output_dim, hid_dim, n_layers)

    return pred_p[:batch], h_out_p[:, :batch], c_out_p[:, :batch]


def decoder_reference(raw, inp, hidden, cell):
    """Pure-JAX f32 reference matching torch nn.LSTM (one step) + nn.Linear, from raw weights."""
    n_layers, _, H = hidden.shape
    x = inp
    h_out, c_out = [], []
    for l in range(n_layers):
        gates = (x @ raw[f"w_ih_{l}"].T + hidden[l] @ raw[f"w_hh_{l}"].T
                 + raw[f"b_ih_{l}"] + raw[f"b_hh_{l}"])
        i_g = jax.nn.sigmoid(gates[:, 0 * H:1 * H])
        f_g = jax.nn.sigmoid(gates[:, 1 * H:2 * H])
        g_g = jnp.tanh(gates[:, 2 * H:3 * H])
        o_g = jax.nn.sigmoid(gates[:, 3 * H:4 * H])
        c_new = f_g * cell[l] + i_g * g_g
        h_new = o_g * jnp.tanh(c_new)
        h_out.append(h_new)
        c_out.append(c_new)
        x = h_new
    pred = x @ raw["w_fc"].T + raw["b_fc"]
    return pred, jnp.stack(h_out), jnp.stack(c_out)


def init_decoder_params(key, output_dim, hid_dim, n_layers):
    """Deterministic raw init mirroring nn.LSTM / nn.Linear parameter shapes."""
    raw = {}
    bound = 1.0 / jnp.sqrt(hid_dim)
    keys = jax.random.split(key, 4 * n_layers + 2)
    k_idx = 0
    for l in range(n_layers):
        in_dim = output_dim if l == 0 else hid_dim
        raw[f"w_ih_{l}"] = jax.random.uniform(keys[k_idx], (4 * hid_dim, in_dim),
                                              jnp.float32, -bound, bound); k_idx += 1
        raw[f"w_hh_{l}"] = jax.random.uniform(keys[k_idx], (4 * hid_dim, hid_dim),
                                              jnp.float32, -bound, bound); k_idx += 1
        raw[f"b_ih_{l}"] = jax.random.uniform(keys[k_idx], (4 * hid_dim,),
                                              jnp.float32, -bound, bound); k_idx += 1
        raw[f"b_hh_{l}"] = jax.random.uniform(keys[k_idx], (4 * hid_dim,),
                                              jnp.float32, -bound, bound); k_idx += 1
    raw["w_fc"] = jax.random.uniform(keys[k_idx], (output_dim, hid_dim),
                                     jnp.float32, -bound, bound); k_idx += 1
    raw["b_fc"] = jax.random.uniform(keys[k_idx], (output_dim,),
                                     jnp.float32, -bound, bound)
    return raw


if __name__ == "__main__":
    OUTPUT_DIM = 32
    HID_DIM = 32
    N_LAYERS = 2
    BATCH = 4

    key = jax.random.PRNGKey(0)
    k_params, k_inp, k_h, k_c = jax.random.split(key, 4)

    raw = init_decoder_params(k_params, OUTPUT_DIM, HID_DIM, N_LAYERS)
    packed = pack_decoder_params(raw, OUTPUT_DIM, HID_DIM, N_LAYERS)

    inp = jax.random.normal(k_inp, (BATCH, OUTPUT_DIM), jnp.float32)
    hidden = jax.random.normal(k_h, (N_LAYERS, BATCH, HID_DIM), jnp.float32)
    cell = jax.random.normal(k_c, (N_LAYERS, BATCH, HID_DIM), jnp.float32)

    pred, h_new, c_new = decoder_forward(packed, inp, hidden, cell)
    jax.block_until_ready((pred, h_new, c_new))

    # Sanity-check against pure-JAX f32 reference built from the raw (unpadded) weights.
    # Tolerance loosened because kernel weights are stored/multiplied in bf16.
    pred_ref, h_ref, c_ref = decoder_reference(raw, inp, hidden, cell)
    assert jnp.allclose(pred, pred_ref, atol=3e-2, rtol=3e-2)
    assert jnp.allclose(h_new, h_ref, atol=3e-2, rtol=3e-2)
    assert jnp.allclose(c_new, c_ref, atol=3e-2, rtol=3e-2)

    print("KERNEL_OK")
</pallas_src>

<mosaic_0001>
module attributes {stable_mosaic.version = 11 : i64} {
  func.func @kernel(%arg0: memref<8x32xf32, #tpu.memory_space<vmem>>, %arg1: memref<2x8x32xf32, #tpu.memory_space<vmem>>, %arg2: memref<2x8x32xf32, #tpu.memory_space<vmem>>, %arg3: memref<64x128xbf16, #tpu.memory_space<vmem>>, %arg4: memref<1x128xf32, #tpu.memory_space<vmem>>, %arg5: memref<64x128xbf16, #tpu.memory_space<vmem>>, %arg6: memref<1x128xf32, #tpu.memory_space<vmem>>, %arg7: memref<32x32xbf16, #tpu.memory_space<vmem>>, %arg8: memref<1x32xf32, #tpu.memory_space<vmem>>, %arg9: memref<8x32xf32, #tpu.memory_space<vmem>>, %arg10: memref<2x8x32xf32, #tpu.memory_space<vmem>>, %arg11: memref<2x8x32xf32, #tpu.memory_space<vmem>>) attributes {dimension_semantics = [], scalar_prefetch = 0 : i64, scratch_operands = 0 : i64, tpu.core_type = #tpu.core_type<tc>} {
    %c0 = arith.constant 0 : index
    %c0_0 = arith.constant 0 : index
    %0 = vector.load %arg0[%c0, %c0_0] : memref<8x32xf32, #tpu.memory_space<vmem>>, vector<8x32xf32>
    %c0_1 = arith.constant 0 : index
    %c0_2 = arith.constant 0 : index
    %1 = vector.load %arg3[%c0_1, %c0_2] : memref<64x128xbf16, #tpu.memory_space<vmem>>, vector<64x128xbf16>
    %c0_3 = arith.constant 0 : index
    %c0_4 = arith.constant 0 : index
    %2 = vector.load %arg4[%c0_3, %c0_4] : memref<1x128xf32, #tpu.memory_space<vmem>>, vector<1x128xf32>
    %c0_5 = arith.constant 0 : index
    %c0_6 = arith.constant 0 : index
    %c0_7 = arith.constant 0 : index
    %3 = vector.load %arg1[%c0_5, %c0_6, %c0_7] : memref<2x8x32xf32, #tpu.memory_space<vmem>>, vector<1x8x32xf32>
    %4 = vector.shape_cast %3 : vector<1x8x32xf32> to vector<8x32xf32>
    %c0_8 = arith.constant 0 : index
    %c0_9 = arith.constant 0 : index
    %c0_10 = arith.constant 0 : index
    %5 = vector.load %arg2[%c0_8, %c0_9, %c0_10] : memref<2x8x32xf32, #tpu.memory_space<vmem>>, vector<1x8x32xf32>
    %6 = vector.shape_cast %5 : vector<1x8x32xf32> to vector<8x32xf32>
    %7 = arith.truncf %0 : vector<8x32xf32> to vector<8x32xbf16>
    %8 = vector.extract_strided_slice %1 {offsets = [0, 0], sizes = [32, 128], strides = [1, 1]} : vector<64x128xbf16> to vector<32x128xbf16>
    %cst = arith.constant dense<0.000000e+00> : vector<8x128xf32>
    %9 = tpu.matmul %7, %8, %cst {dimension_numbers = #tpu.dot_dimension_numbers<[1], [0], [0], [1], [0, 0, 1, 1], [], []>} : vector<8x32xbf16>, vector<32x128xbf16>, vector<8x128xf32> -> vector<8x128xf32>
    %10 = arith.truncf %4 : vector<8x32xf32> to vector<8x32xbf16>
    %11 = vector.extract_strided_slice %1 {offsets = [32, 0], sizes = [32, 128], strides = [1, 1]} : vector<64x128xbf16> to vector<32x128xbf16>
    %cst_11 = arith.constant dense<0.000000e+00> : vector<8x128xf32>
    %12 = tpu.matmul %10, %11, %cst_11 {dimension_numbers = #tpu.dot_dimension_numbers<[1], [0], [0], [1], [0, 0, 1, 1], [], []>} : vector<8x32xbf16>, vector<32x128xbf16>, vector<8x128xf32> -> vector<8x128xf32>
    %13 = arith.addf %9, %12 : vector<8x128xf32>
    %14 = vector.broadcast %2 : vector<1x128xf32> to vector<8x128xf32>
    %15 = arith.addf %13, %14 : vector<8x128xf32>
    %16 = vector.extract_strided_slice %15 {offsets = [0, 0], sizes = [8, 32], strides = [1, 1]} : vector<8x128xf32> to vector<8x32xf32>
    %17 = arith.negf %16 : vector<8x32xf32>
    %18 = math.exp %17 : vector<8x32xf32>
    %cst_12 = arith.constant 1.000000e+00 : f32
    %19 = vector.broadcast %cst_12 : f32 to vector<8x32xf32>
    %20 = arith.addf %19, %18 : vector<8x32xf32>
    %21 = arith.divf %19, %20 : vector<8x32xf32>
    %22 = vector.extract_strided_slice %15 {offsets = [0, 32], sizes = [8, 32], strides = [1, 1]} : vector<8x128xf32> to vector<8x32xf32>
    %23 = arith.negf %22 : vector<8x32xf32>
    %24 = math.exp %23 : vector<8x32xf32>
    %cst_13 = arith.constant 1.000000e+00 : f32
    %25 = vector.broadcast %cst_13 : f32 to vector<8x32xf32>
    %26 = arith.addf %25, %24 : vector<8x32xf32>
    %27 = arith.divf %25, %26 : vector<8x32xf32>
    %28 = vector.extract_strided_slice %15 {offsets = [0, 64], sizes = [8, 32], strides = [1, 1]} : vector<8x128xf32> to vector<8x32xf32>
    %29 = math.tanh %28 : vector<8x32xf32>
    %30 = vector.extract_strided_slice %15 {offsets = [0, 96], sizes = [8, 32], strides = [1, 1]} : vector<8x128xf32> to vector<8x32xf32>
    %31 = arith.negf %30 : vector<8x32xf32>
    %32 = math.exp %31 : vector<8x32xf32>
    %cst_14 = arith.constant 1.000000e+00 : f32
    %33 = vector.broadcast %cst_14 : f32 to vector<8x32xf32>
    %34 = arith.addf %33, %32 : vector<8x32xf32>
    %35 = arith.divf %33, %34 : vector<8x32xf32>
    %36 = arith.mulf %27, %6 : vector<8x32xf32>
    %37 = arith.mulf %21, %29 : vector<8x32xf32>
    %38 = arith.addf %36, %37 : vector<8x32xf32>
    %39 = math.tanh %38 : vector<8x32xf32>
    %40 = arith.mulf %35, %39 : vector<8x32xf32>
    %c0_15 = arith.constant 0 : index
    %c0_16 = arith.constant 0 : index
    %c0_17 = arith.constant 0 : index
    %41 = vector.load %arg10[%c0_15, %c0_16, %c0_17] : memref<2x8x32xf32, #tpu.memory_space<vmem>>, vector<1x8x32xf32>
    %42 = vector.shape_cast %41 : vector<1x8x32xf32> to vector<8x32xf32>
    %43 = vector.shape_cast %40 : vector<8x32xf32> to vector<1x8x32xf32>
    tpu.vector_store %arg10[%c0_15, %c0_16, %c0_17], %43 {strides = array<i32>} : memref<2x8x32xf32, #tpu.memory_space<vmem>>, vector<1x8x32xf32>,
    %c0_18 = arith.constant 0 : index
    %c0_19 = arith.constant 0 : index
    %c0_20 = arith.constant 0 : index
    %44 = vector.load %arg11[%c0_18, %c0_19, %c0_20] : memref<2x8x32xf32, #tpu.memory_space<vmem>>, vector<1x8x32xf32>
    %45 = vector.shape_cast %44 : vector<1x8x32xf32> to vector<8x32xf32>
    %46 = vector.shape_cast %38 : vector<8x32xf32> to vector<1x8x32xf32>
    tpu.vector_store %arg11[%c0_18, %c0_19, %c0_20], %46 {strides = array<i32>} : memref<2x8x32xf32, #tpu.memory_space<vmem>>, vector<1x8x32xf32>,
    %c0_21 = arith.constant 0 : index
    %c0_22 = arith.constant 0 : index
    %47 = vector.load %arg5[%c0_21, %c0_22] : memref<64x128xbf16, #tpu.memory_space<vmem>>, vector<64x128xbf16>
    %c0_23 = arith.constant 0 : index
    %c0_24 = arith.constant 0 : index
    %48 = vector.load %arg6[%c0_23, %c0_24] : memref<1x128xf32, #tpu.memory_space<vmem>>, vector<1x128xf32>
    %c1 = arith.constant 1 : index
    %c0_25 = arith.constant 0 : index
    %c0_26 = arith.constant 0 : index
    %49 = vector.load %arg1[%c1, %c0_25, %c0_26] : memref<2x8x32xf32, #tpu.memory_space<vmem>>, vector<1x8x32xf32>
    %50 = vector.shape_cast %49 : vector<1x8x32xf32> to vector<8x32xf32>
    %c1_27 = arith.constant 1 : index
    %c0_28 = arith.constant 0 : index
    %c0_29 = arith.constant 0 : index
    %51 = vector.load %arg2[%c1_27, %c0_28, %c0_29] : memref<2x8x32xf32, #tpu.memory_space<vmem>>, vector<1x8x32xf32>
    %52 = vector.shape_cast %51 : vector<1x8x32xf32> to vector<8x32xf32>
    %53 = arith.truncf %40 : vector<8x32xf32> to vector<8x32xbf16>
    %54 = vector.extract_strided_slice %47 {offsets = [0, 0], sizes = [32, 128], strides = [1, 1]} : vector<64x128xbf16> to vector<32x128xbf16>
    %cst_30 = arith.constant dense<0.000000e+00> : vector<8x128xf32>
    %55 = tpu.matmul %53, %54, %cst_30 {dimension_numbers = #tpu.dot_dimension_numbers<[1], [0], [0], [1], [0, 0, 1, 1], [], []>} : vector<8x32xbf16>, vector<32x128xbf16>, vector<8x128xf32> -> vector<8x128xf32>
    %56 = arith.truncf %50 : vector<8x32xf32> to vector<8x32xbf16>
    %57 = vector.extract_strided_slice %47 {offsets = [32, 0], sizes = [32, 128], strides = [1, 1]} : vector<64x128xbf16> to vector<32x128xbf16>
    %cst_31 = arith.constant dense<0.000000e+00> : vector<8x128xf32>
    %58 = tpu.matmul %56, %57, %cst_31 {dimension_numbers = #tpu.dot_dimension_numbers<[1], [0], [0], [1], [0, 0, 1, 1], [], []>} : vector<8x32xbf16>, vector<32x128xbf16>, vector<8x128xf32> -> vector<8x128xf32>
    %59 = arith.addf %55, %58 : vector<8x128xf32>
    %60 = vector.broadcast %48 : vector<1x128xf32> to vector<8x128xf32>
    %61 = arith.addf %59, %60 : vector<8x128xf32>
    %62 = vector.extract_strided_slice %61 {offsets = [0, 0], sizes = [8, 32], strides = [1, 1]} : vector<8x128xf32> to vector<8x32xf32>
    %63 = arith.negf %62 : vector<8x32xf32>
    %64 = math.exp %63 : vector<8x32xf32>
    %cst_32 = arith.constant 1.000000e+00 : f32
    %65 = vector.broadcast %cst_32 : f32 to vector<8x32xf32>
    %66 = arith.addf %65, %64 : vector<8x32xf32>
    %67 = arith.divf %65, %66 : vector<8x32xf32>
    %68 = vector.extract_strided_slice %61 {offsets = [0, 32], sizes = [8, 32], strides = [1, 1]} : vector<8x128xf32> to vector<8x32xf32>
    %69 = arith.negf %68 : vector<8x32xf32>
    %70 = math.exp %69 : vector<8x32xf32>
    %cst_33 = arith.constant 1.000000e+00 : f32
    %71 = vector.broadcast %cst_33 : f32 to vector<8x32xf32>
    %72 = arith.addf %71, %70 : vector<8x32xf32>
    %73 = arith.divf %71, %72 : vector<8x32xf32>
    %74 = vector.extract_strided_slice %61 {offsets = [0, 64], sizes = [8, 32], strides = [1, 1]} : vector<8x128xf32> to vector<8x32xf32>
    %75 = math.tanh %74 : vector<8x32xf32>
    %76 = vector.extract_strided_slice %61 {offsets = [0, 96], sizes = [8, 32], strides = [1, 1]} : vector<8x128xf32> to vector<8x32xf32>
    %77 = arith.negf %76 : vector<8x32xf32>
    %78 = math.exp %77 : vector<8x32xf32>
    %cst_34 = arith.constant 1.000000e+00 : f32
    %79 = vector.broadcast %cst_34 : f32 to vector<8x32xf32>
    %80 = arith.addf %79, %78 : vector<8x32xf32>
    %81 = arith.divf %79, %80 : vector<8x32xf32>
    %82 = arith.mulf %73, %52 : vector<8x32xf32>
    %83 = arith.mulf %67, %75 : vector<8x32xf32>
    %84 = arith.addf %82, %83 : vector<8x32xf32>
    %85 = math.tanh %84 : vector<8x32xf32>
    %86 = arith.mulf %81, %85 : vector<8x32xf32>
    %c1_35 = arith.constant 1 : index
    %c0_36 = arith.constant 0 : index
    %c0_37 = arith.constant 0 : index
    %87 = vector.load %arg10[%c1_35, %c0_36, %c0_37] : memref<2x8x32xf32, #tpu.memory_space<vmem>>, vector<1x8x32xf32>
    %88 = vector.shape_cast %87 : vector<1x8x32xf32> to vector<8x32xf32>
    %89 = vector.shape_cast %86 : vector<8x32xf32> to vector<1x8x32xf32>
    tpu.vector_store %arg10[%c1_35, %c0_36, %c0_37], %89 {strides = array<i32>} : memref<2x8x32xf32, #tpu.memory_space<vmem>>, vector<1x8x32xf32>,
    %c1_38 = arith.constant 1 : index
    %c0_39 = arith.constant 0 : index
    %c0_40 = arith.constant 0 : index
    %90 = vector.load %arg11[%c1_38, %c0_39, %c0_40] : memref<2x8x32xf32, #tpu.memory_space<vmem>>, vector<1x8x32xf32>
    %91 = vector.shape_cast %90 : vector<1x8x32xf32> to vector<8x32xf32>
    %92 = vector.shape_cast %84 : vector<8x32xf32> to vector<1x8x32xf32>
    tpu.vector_store %arg11[%c1_38, %c0_39, %c0_40], %92 {strides = array<i32>} : memref<2x8x32xf32, #tpu.memory_space<vmem>>, vector<1x8x32xf32>,
    %93 = arith.truncf %86 : vector<8x32xf32> to vector<8x32xbf16>
    %c0_41 = arith.constant 0 : index
    %c0_42 = arith.constant 0 : index
    %94 = vector.load %arg7[%c0_41, %c0_42] : memref<32x32xbf16, #tpu.memory_space<vmem>>, vector<32x32xbf16>
    %cst_43 = arith.constant dense<0.000000e+00> : vector<8x32xf32>
    %95 = tpu.matmul %93, %94, %cst_43 {dimension_numbers = #tpu.dot_dimension_numbers<[1], [0], [0], [1], [0, 0, 1, 1], [], []>} : vector<8x32xbf16>, vector<32x32xbf16>, vector<8x32xf32> -> vector<8x32xf32>
    %c0_44 = arith.constant 0 : index
    %c0_45 = arith.constant 0 : index
    %96 = vector.load %arg8[%c0_44, %c0_45] : memref<1x32xf32, #tpu.memory_space<vmem>>, vector<1x32xf32>
    %97 = vector.broadcast %96 : vector<1x32xf32> to vector<8x32xf32>
    %98 = arith.addf %95, %97 : vector<8x32xf32>
    %c0_46 = arith.constant 0 : index
    %c0_47 = arith.constant 0 : index
    %99 = vector.load %arg9[%c0_46, %c0_47] : memref<8x32xf32, #tpu.memory_space<vmem>>, vector<8x32xf32>
    tpu.vector_store %arg9[%c0_46, %c0_47], %98 {strides = array<i32>} : memref<8x32xf32, #tpu.memory_space<vmem>>, vector<8x32xf32>,
    return
  }
}

</mosaic_0001>

<llo_original>
// kernel: tpu_custom_call.1
$region0: #{tpu_custom_call.1}
  #allocation0 [shape = 'u32[]', space=smem, size = 0x4, offset = 0x4, fixed_abs, tag = 'smem constant byte address 0x4 - core index']
  #allocation1 [shape = 'u32[144,128]{1,0:T(1,128)}', space=vmem, size = 0x12000, scoped, tag = 'internal scratch']
  %s0 = inlined_call_operand.vmem [shape: f32[8,32], index: 0, kind: input, shape index: {}]
  %s1 = inlined_call_operand.hbm [shape: f32[2,8,32], index: 1, kind: input, shape index: {}, may-alias: {1,10}]
  %s2 = inlined_call_operand.hbm [shape: f32[2,8,32], index: 2, kind: input, shape index: {}, may-alias: {2,11}]
  %s3 = inlined_call_operand.vmem [shape: bf16[64,128], index: 3, kind: input, shape index: {}]
  %s4 = inlined_call_operand.vmem [shape: f32[1,128], index: 4, kind: input, shape index: {}]
  %s5 = inlined_call_operand.vmem [shape: bf16[64,128], index: 5, kind: input, shape index: {}]
  %s6 = inlined_call_operand.vmem [shape: f32[1,128], index: 6, kind: input, shape index: {}]
  %s7 = inlined_call_operand.hbm [shape: bf16[32,32], index: 7, kind: input, shape index: {}]
  %s8 = inlined_call_operand.hbm [shape: f32[1,32], index: 8, kind: input, shape index: {}]
  %s9 = inlined_call_operand.hbm [shape: f32[8,32], index: 9, kind: output, shape index: {0}]
  %s10 = inlined_call_operand.hbm [shape: f32[2,8,32], index: 10, kind: output, shape index: {1}, may-alias: {1,10}]
  %s11 = inlined_call_operand.hbm [shape: f32[2,8,32], index: 11, kind: output, shape index: {2}, may-alias: {2,11}]
  %12 = xla_tuple %s9, %s10, %s11
  %s13 = sld [smem:[#allocation0]]
  $region78: #{tpu_custom_call.1} parent=0
    _
  %s15 = ssub.s32 1, %s13
  %s16 = scalar_select 0, %s15, %s13
  $region1: #{tpu_custom_call.1} parent=0
    #allocation2 [shape = 'u8[8192]{0}', space=vmem, size = 0x2000, scoped, tag = 'input window, operand 1, single buffered']
    #allocation3 [shape = 's32[1]{0}', space=sflag, size = 0x4, scoped, tag = 'scoped memory for tpu_custom_call.1']
    #allocation4 [shape = 's32[1]{0}', space=sflag, size = 0x4, scoped, tag = 'scoped memory for tpu_custom_call.1']
    #allocation5 [shape = 'u8[8192]{0}', space=vmem, size = 0x2000, scoped, tag = 'input window, operand 2, single buffered']
    #allocation6 [shape = 's32[1]{0}', space=sflag, size = 0x4, scoped, tag = 'scoped memory for tpu_custom_call.1']
    #allocation7 [shape = 'u8[8192]{0}', space=vmem, size = 0x2000, scoped, tag = 'input window, operand 7, single buffered']
    #allocation8 [shape = 'u8[512]{0}', space=vmem, size = 0x400, scoped, tag = 'input window, operand 8, single buffered']
    #allocation9 [shape = 's32[1]{0}', space=sflag, size = 0x4, scoped, tag = 'scoped memory for tpu_custom_call.1']
    #allocation10 [shape = 'u8[4096]{0}', space=vmem, size = 0x1000, scoped, tag = 'output window, operand 0, single buffered']
    #allocation11 [shape = 'u8[8192]{0}', space=vmem, size = 0x2000, scoped, tag = 'output window, operand 1, single buffered']
    #allocation12 [shape = 's32[1]{0}', space=sflag, size = 0x4, scoped, tag = 'scoped memory for tpu_custom_call.1']
    #allocation13 [shape = 'u8[8192]{0}', space=vmem, size = 0x2000, scoped, tag = 'output window, operand 2, single buffered']
    %17 = vsyncpa [#allocation3], 0
    %18 = vsyncpa [#allocation6], 0
    %19 = vsyncpa [#allocation9], 0
    %20 = vsyncpa [#allocation4], 0
    %21 = vsyncpa [#allocation12], 0
    // Predicated region
    $region2: #{tpu_custom_call.1} parent=1 // pred_check
      _
    $region3: #{tpu_custom_call.1} parent=1 // pred_check_branch
      %23 = sbr.rel (0) target = $region5
    $region4: #{tpu_custom_call.1} parent=1 // pred_region
      _
    $region5: #{tpu_custom_call.1} parent=1 // pred_fallthru
      _
    // Predicated region
    $region6: #{tpu_custom_call.1} parent=1 // pred_check
      _
    $region7: #{tpu_custom_call.1} parent=1 // pred_check_branch
      %25 = sbr.rel (0) target = $region9
    $region8: #{tpu_custom_call.1} parent=1 // pred_region
      %s27 = ssub.s32 256, 256
      %28 = vsyncadd [#allocation3], %s27
      %s29 = sshll.u32 [#allocation2], 4
      %s30 = int_to_ptr.vmem [resolvable:$true] %s29
      %35 = dma.hbm_to_vmem [thread:$0]  %s1, 256, %s30, [#allocation3], 128, 128, 8
    $region9: #{tpu_custom_call.1} parent=1 // pred_fallthru
      _
    // Predicated region
    $region10: #{tpu_custom_call.1} parent=1 // pred_check
      _
    $region11: #{tpu_custom_call.1} parent=1 // pred_check_branch
      %37 = sbr.rel (0) target = $region13
    $region12: #{tpu_custom_call.1} parent=1 // pred_region
      %s39 = ssub.s32 256, 256
      %40 = vsyncadd [#allocation6], %s39
      %s41 = sshll.u32 [#allocation5], 4
      %s42 = int_to_ptr.vmem [resolvable:$true] %s41
      %47 = dma.hbm_to_vmem [thread:$0]  %s2, 256, %s42, [#allocation6], 128, 128, 8
    $region13: #{tpu_custom_call.1} parent=1 // pred_fallthru
      _
    // Predicated region
    $region14: #{tpu_custom_call.1} parent=1 // pred_check
      _
    $region15: #{tpu_custom_call.1} parent=1 // pred_check_branch
      %49 = sbr.rel (0) target = $region17
    $region16: #{tpu_custom_call.1} parent=1 // pred_region
      _
    $region17: #{tpu_custom_call.1} parent=1 // pred_fallthru
      _
    // Predicated region
    $region18: #{tpu_custom_call.1} parent=1 // pred_check
      _
    $region19: #{tpu_custom_call.1} parent=1 // pred_check_branch
      %51 = sbr.rel (0) target = $region21
    $region20: #{tpu_custom_call.1} parent=1 // pred_region
      _
    $region21: #{tpu_custom_call.1} parent=1 // pred_fallthru
      _
    // Predicated region
    $region22: #{tpu_custom_call.1} parent=1 // pred_check
      _
    $region23: #{tpu_custom_call.1} parent=1 // pred_check_branch
      %53 = sbr.rel (0) target = $region25
    $region24: #{tpu_custom_call.1} parent=1 // pred_region
      _
    $region25: #{tpu_custom_call.1} parent=1 // pred_fallthru
      _
    // Predicated region
    $region26: #{tpu_custom_call.1} parent=1 // pred_check
      _
    $region27: #{tpu_custom_call.1} parent=1 // pred_check_branch
      %55 = sbr.rel (0) target = $region29
    $region28: #{tpu_custom_call.1} parent=1 // pred_region
      _
    $region29: #{tpu_custom_call.1} parent=1 // pred_fallthru
      _
    // Predicated region
    $region30: #{tpu_custom_call.1} parent=1 // pred_check
      _
    $region31: #{tpu_custom_call.1} parent=1 // pred_check_branch
      %57 = sbr.rel (0) target = $region33
    $region32: #{tpu_custom_call.1} parent=1 // pred_region
      %s59 = ssub.s32 256, 256
      %60 = vsyncadd [#allocation6], %s59
      %s61 = sshll.u32 [#allocation7], 4
      %s62 = int_to_ptr.vmem [resolvable:$true] %s61
      %67 = dma.hbm_to_vmem [thread:$0]  %s7, 256, %s62, [#allocation6], 64, 64, 4
    $region33: #{tpu_custom_call.1} parent=1 // pred_fallthru
      _
    // Predicated region
    $region34: #{tpu_custom_call.1} parent=1 // pred_check
      _
    $region35: #{tpu_custom_call.1} parent=1 // pred_check_branch
      %69 = sbr.rel (0) target = $region37
    $region36: #{tpu_custom_call.1} parent=1 // pred_region
      %s71 = ssub.s32 16, 16
      %72 = vsyncadd [#allocation9], %s71
      %s74 = sshll.u32 [#allocation8], 4
      %s75 = int_to_ptr.vmem [resolvable:$true] %s74
      %77 = dma.hbm_to_vmem [thread:$0]  %s8, 16, %s75, [#allocation9]
    $region37: #{tpu_custom_call.1} parent=1 // pred_fallthru
      _
    // Predicated region
    $region38: #{tpu_custom_call.1} parent=1 // pred_check
      _
    $region39: #{tpu_custom_call.1} parent=1 // pred_check_branch
      %79 = sbr.rel (0) target = $region41
    $region40: #{tpu_custom_call.1} parent=1 // pred_region
      %80 = dma.done [#allocation3], 256
    $region41: #{tpu_custom_call.1} parent=1 // pred_fallthru
      _
    // Predicated region
    $region42: #{tpu_custom_call.1} parent=1 // pred_check
      _
    $region43: #{tpu_custom_call.1} parent=1 // pred_check_branch
      %82 = sbr.rel (0) target = $region45
    $region44: #{tpu_custom_call.1} parent=1 // pred_region
      %83 = dma.done [#allocation6], 256
    $region45: #{tpu_custom_call.1} parent=1 // pred_fallthru
      _
    // Predicated region
    $region46: #{tpu_custom_call.1} parent=1 // pred_check
      _
    $region47: #{tpu_custom_call.1} parent=1 // pred_check_branch
      %85 = sbr.rel (0) target = $region49
    $region48: #{tpu_custom_call.1} parent=1 // pred_region
      %86 = dma.done [#allocation6], 256
    $region49: #{tpu_custom_call.1} parent=1 // pred_fallthru
      _
    // Predicated region
    $region50: #{tpu_custom_call.1} parent=1 // pred_check
      _
    $region51: #{tpu_custom_call.1} parent=1 // pred_check_branch
      %88 = sbr.rel (0) target = $region53
    $region52: #{tpu_custom_call.1} parent=1 // pred_region
      %89 = dma.done [#allocation9], 16
    $region53: #{tpu_custom_call.1} parent=1 // pred_fallthru
      _
    %v91 = vld [vmem:[%s0] sm:$0xff]
    %v92 = vld [vmem:[%s3] sm:$0xf]
    %v93 = vld [vmem:[%s3 + $0x4] sm:$0xf]
    %v94 = vld [vmem:[%s3 + $0x8] sm:$0xf]
    %v95 = vld [vmem:[%s3 + $0xc] sm:$0xf]
    %v96 = vld [vmem:[%s3 + $0x10] sm:$0xf]
    %v97 = vld [vmem:[%s3 + $0x14] sm:$0xf]
    %v98 = vld [vmem:[%s3 + $0x18] sm:$0xf]
    %v99 = vld [vmem:[%s3 + $0x1c] sm:$0xf]
    %v100 = vld [vmem:[%s4] sm:$0x1]
    %v101 = vld [vmem:[#allocation2] sm:$0xff]
    %v102 = vld [vmem:[#allocation5] sm:$0xff]
    %v103 = vpack.c.bf16 %v91, %v91
    %v104 = vpack.c.bf16 %v101, %v101
    %v109 = vunpack.c.l.b16 %v96
    %v110 = vunpack.c.l.b16 %v97
    %v111 = vunpack.c.l.b16 %v98
    %v112 = vunpack.c.l.b16 %v99
    %v113 = vpack.c.b16 %v110, %v109
    %v114 = vpack.c.b16 %v112, %v111
    %vm117 = vcmask 261120
    %v119 = vsel %vm117, %v104, 0
    %121 = vmatprep.subr.bf16.mxu0 0
    %122 = vmatpush1.bf16.msra.mxu0 %v113
    %123 = vmatprep.subr.bf16.mxu0 0
    %124 = vmatpush1.bf16.msra.mxu0 %v114
    %125 = vmatprep.subr.bf16.mxu0 0
    %126 = vmatpush1.bf16.msra.mxu0 0
    %127 = vmatprep.subr.bf16.mxu0 0
    %128 = vmatpush1.bf16.msra.mxu0 0
    %129 = vmatprep.subr.bf16.mxu0 0
    %130 = vmatpush1.bf16.msra.mxu0 0
    %131 = vmatprep.subr.bf16.mxu0 0
    %132 = vmatpush1.bf16.msra.mxu0 0
    %133 = vmatprep.subr.bf16.mxu0 0
    %134 = vmatpush1.bf16.msra.mxu0 0
    %135 = vmatprep.subr.bf16.mxu0 0
    %136 = vmatpush1.bf16.msra.mxu0 0
    %137 = vmatprep.subr.bf16.mxu0 0
    %138 = vmatpush1.bf16.msra.mxu0 0
    %139 = vmatprep.subr.bf16.mxu0 0
    %140 = vmatpush1.bf16.msra.mxu0 0
    %141 = vmatprep.subr.bf16.mxu0 0
    %142 = vmatpush1.bf16.msra.mxu0 0
    %143 = vmatprep.subr.bf16.mxu0 0
    %144 = vmatpush1.bf16.msra.mxu0 0
    %145 = vmatprep.subr.bf16.mxu0 0
    %146 = vmatpush1.bf16.msra.mxu0 0
    %147 = vmatprep.subr.bf16.mxu0 0
    %148 = vmatpush1.bf16.msra.mxu0 0
    %149 = vmatprep.subr.bf16.mxu0 0
    %150 = vmatpush1.bf16.msra.mxu0 0
    %151 = vmatprep.subr.bf16.mxu0 0
    %152 = vmatpush1.bf16.msra.mxu0 0
    %153 = vmatprep.mubr.bf16.mxu0 0
    %154 = vmatmul.mubr.bf16.gmra.mrb[0].mxu0 %v119
    %v155 = vpop.f32.mrb[0].mxu0
    %v156 = vadd.f32 0.0, %v155
    %v157 = vpop.f32.mrb[0].mxu0
    %v158 = vpop.f32.mrb[0].mxu0
    %v159 = vpop.f32.mrb[0].mxu0
    %160 = vdwg.mxu0
    %v165 = vunpack.c.l.b16 %v92
    %v166 = vunpack.c.l.b16 %v93
    %v167 = vunpack.c.l.b16 %v94
    %v168 = vunpack.c.l.b16 %v95
    %v169 = vpack.c.b16 %v166, %v165
    %v170 = vpack.c.b16 %v168, %v167
    %v174 = vsel %vm117, %v103, 0
    %176 = vmatprep.subr.bf16.mxu0 0
    %177 = vmatpush1.bf16.msra.mxu0 %v169
    %178 = vmatprep.subr.bf16.mxu0 0
    %179 = vmatpush1.bf16.msra.mxu0 %v170
    %180 = vmatprep.subr.bf16.mxu0 0
    %181 = vmatpush1.bf16.msra.mxu0 0
    %182 = vmatprep.subr.bf16.mxu0 0
    %183 = vmatpush1.bf16.msra.mxu0 0
    %184 = vmatprep.subr.bf16.mxu0 0
    %185 = vmatpush1.bf16.msra.mxu0 0
    %186 = vmatprep.subr.bf16.mxu0 0
    %187 = vmatpush1.bf16.msra.mxu0 0
    %188 = vmatprep.subr.bf16.mxu0 0
    %189 = vmatpush1.bf16.msra.mxu0 0
    %190 = vmatprep.subr.bf16.mxu0 0
    %191 = vmatpush1.bf16.msra.mxu0 0
    %192 = vmatprep.subr.bf16.mxu0 0
    %193 = vmatpush1.bf16.msra.mxu0 0
    %194 = vmatprep.subr.bf16.mxu0 0
    %195 = vmatpush1.bf16.msra.mxu0 0
    %196 = vmatprep.subr.bf16.mxu0 0
    %197 = vmatpush1.bf16.msra.mxu0 0
    %198 = vmatprep.subr.bf16.mxu0 0
    %199 = vmatpush1.bf16.msra.mxu0 0
    %200 = vmatprep.subr.bf16.mxu0 0
    %201 = vmatpush1.bf16.msra.mxu0 0
    %202 = vmatprep.subr.bf16.mxu0 0
    %203 = vmatpush1.bf16.msra.mxu0 0
    %204 = vmatprep.subr.bf16.mxu0 0
    %205 = vmatpush1.bf16.msra.mxu0 0
    %206 = vmatprep.subr.bf16.mxu0 0
    %207 = vmatpush1.bf16.msra.mxu0 0
    %208 = vmatprep.mubr.bf16.mxu0 0
    %209 = vmatmul.mubr.bf16.gmra.mrb[0].mxu0 %v174
    %v210 = vpop.f32.mrb[0].mxu0
    %v211 = vadd.f32 %v156, %v210
    %v212 = vpop.f32.mrb[0].mxu0
    %v213 = vpop.f32.mrb[0].mxu0
    %v214 = vpop.f32.mrb[0].mxu0
    %215 = vdwg.mxu0
    %v217 = vlaneseq
    %v218 = vshrl.u32 %v217, 7
    %v219 = vsub.s32 0, %v218
    %v220 = vrot.slane %v100, %v219
    %v222 = vadd.f32 %v211, %v220
    %v223 = vxor.u32 %v222, 2147483648
    %v224 = vmul.f32 %v223, 1.442695
    %v225 = vpow.pop %v224
    %v226 = vadd.f32 %v225, 1.0
    %v227 = vrcp.pop %v226
    %v228 = vmul.f32 1.0, %v227
    %v229 = vtanh.pop %v222
    %231 = vrot.lane.b32.xlu0 %v102, 32
    %v232 = vpop.permute.xlu0 %231
    %v234 = vmul.f32 %v228, %v232
    %236 = vrot.lane.b32.xlu0 %v229, 64
    %v237 = vpop.permute.xlu0 %236
    %v239 = vmul.f32 %v228, %v237
    %241 = vrot.lane.b32.xlu0 %v239, 32
    %v242 = vpop.permute.xlu0 %241
    %v244 = vadd.f32 %v234, %v242
    %v245 = vtanh.pop %v244
    %247 = vrot.lane.b32.xlu0 %v245, 64
    %v248 = vpop.permute.xlu0 %247
    %v250 = vmul.f32 %v228, %v248
    %252 = vrot.lane.b32.xlu0 %v250, 32
    %v253 = vpop.permute.xlu0 %252
    %255 = vst.msk [vmem:[#allocation11] sm:$0xff] %vm117, %v253
    %257 = vrot.lane.b32.xlu0 %v244, 96
    %v258 = vpop.permute.xlu0 %257
    %260 = vst.msk [vmem:[#allocation13] sm:$0xff] %vm117, %v258
    %v261 = vld [vmem:[%s5] sm:$0xf]
    %v262 = vld [vmem:[%s5 + $0x4] sm:$0xf]
    %v263 = vld [vmem:[%s5 + $0x8] sm:$0xf]
    %v264 = vld [vmem:[%s5 + $0xc] sm:$0xf]
    %v265 = vld [vmem:[%s5 + $0x10] sm:$0xf]
    %v266 = vld [vmem:[%s5 + $0x14] sm:$0xf]
    %v267 = vld [vmem:[%s5 + $0x18] sm:$0xf]
    %v268 = vld [vmem:[%s5 + $0x1c] sm:$0xf]
    %v269 = vld [vmem:[%s6] sm:$0x1]
    %s270 = scalar_lea.vmem [#allocation2], 8
    %v271 = vld [vmem:[%s270] sm:$0xff]
    %s272 = scalar_lea.vmem [#allocation5], 8
    %v273 = vld [vmem:[%s272] sm:$0xff]
    %v274 = vpack.c.bf16 %v250, %v250
    %v275 = vpack.c.bf16 %v271, %v271
    %v280 = vunpack.c.l.b16 %v265
    %v281 = vunpack.c.l.b16 %v266
    %v282 = vunpack.c.l.b16 %v267
    %v283 = vunpack.c.l.b16 %v268
    %v284 = vpack.c.b16 %v281, %v280
    %v285 = vpack.c.b16 %v283, %v282
    %v289 = vsel %vm117, %v275, 0
    %291 = vmatprep.subr.bf16.mxu0 0
    %292 = vmatpush1.bf16.msra.mxu0 %v284
    %293 = vmatprep.subr.bf16.mxu0 0
    %294 = vmatpush1.bf16.msra.mxu0 %v285
    %295 = vmatprep.subr.bf16.mxu0 0
    %296 = vmatpush1.bf16.msra.mxu0 0
    %297 = vmatprep.subr.bf16.mxu0 0
    %298 = vmatpush1.bf16.msra.mxu0 0
    %299 = vmatprep.subr.bf16.mxu0 0
    %300 = vmatpush1.bf16.msra.mxu0 0
    %301 = vmatprep.subr.bf16.mxu0 0
    %302 = vmatpush1.bf16.msra.mxu0 0
    %303 = vmatprep.subr.bf16.mxu0 0
    %304 = vmatpush1.bf16.msra.mxu0 0
    %305 = vmatprep.subr.bf16.mxu0 0
    %306 = vmatpush1.bf16.msra.mxu0 0
    %307 = vmatprep.subr.bf16.mxu0 0
    %308 = vmatpush1.bf16.msra.mxu0 0
    %309 = vmatprep.subr.bf16.mxu0 0
    %310 = vmatpush1.bf16.msra.mxu0 0
    %311 = vmatprep.subr.bf16.mxu0 0
    %312 = vmatpush1.bf16.msra.mxu0 0
    %313 = vmatprep.subr.bf16.mxu0 0
    %314 = vmatpush1.bf16.msra.mxu0 0
    %315 = vmatprep.subr.bf16.mxu0 0
    %316 = vmatpush1.bf16.msra.mxu0 0
    %317 = vmatprep.subr.bf16.mxu0 0
    %318 = vmatpush1.bf16.msra.mxu0 0
    %319 = vmatprep.subr.bf16.mxu0 0
    %320 = vmatpush1.bf16.msra.mxu0 0
    %321 = vmatprep.subr.bf16.mxu0 0
    %322 = vmatpush1.bf16.msra.mxu0 0
    %323 = vmatprep.mubr.bf16.mxu0 0
    %324 = vmatmul.mubr.bf16.gmra.mrb[0].mxu0 %v289
    %v325 = vpop.f32.mrb[0].mxu0
    %v326 = vadd.f32 0.0, %v325
    %v327 = vpop.f32.mrb[0].mxu0
    %v328 = vpop.f32.mrb[0].mxu0
    %v329 = vpop.f32.mrb[0].mxu0
    %330 = vdwg.mxu0
    %332 = vrot.lane.b32.xlu0 %v274, 32
    %v333 = vpop.permute.xlu0 %332
    %v338 = vunpack.c.l.b16 %v261
    %v339 = vunpack.c.l.b16 %v262
    %v340 = vunpack.c.l.b16 %v263
    %v341 = vunpack.c.l.b16 %v264
    %v342 = vpack.c.b16 %v339, %v338
    %v343 = vpack.c.b16 %v341, %v340
    %v347 = vsel %vm117, %v333, 0
    %349 = vmatprep.subr.bf16.mxu0 0
    %350 = vmatpush1.bf16.msra.mxu0 %v342
    %351 = vmatprep.subr.bf16.mxu0 0
    %352 = vmatpush1.bf16.msra.mxu0 %v343
    %353 = vmatprep.subr.bf16.mxu0 0
    %354 = vmatpush1.bf16.msra.mxu0 0
    %355 = vmatprep.subr.bf16.mxu0 0
    %356 = vmatpush1.bf16.msra.mxu0 0
    %357 = vmatprep.subr.bf16.mxu0 0
    %358 = vmatpush1.bf16.msra.mxu0 0
    %359 = vmatprep.subr.bf16.mxu0 0
    %360 = vmatpush1.bf16.msra.mxu0 0
    %361 = vmatprep.subr.bf16.mxu0 0
    %362 = vmatpush1.bf16.msra.mxu0 0
    %363 = vmatprep.subr.bf16.mxu0 0
    %364 = vmatpush1.bf16.msra.mxu0 0
    %365 = vmatprep.subr.bf16.mxu0 0
    %366 = vmatpush1.bf16.msra.mxu0 0
    %367 = vmatprep.subr.bf16.mxu0 0
    %368 = vmatpush1.bf16.msra.mxu0 0
    %369 = vmatprep.subr.bf16.mxu0 0
    %370 = vmatpush1.bf16.msra.mxu0 0
    %371 = vmatprep.subr.bf16.mxu0 0
    %372 = vmatpush1.bf16.msra.mxu0 0
    %373 = vmatprep.subr.bf16.mxu0 0
    %374 = vmatpush1.bf16.msra.mxu0 0
    %375 = vmatprep.subr.bf16.mxu0 0
    %376 = vmatpush1.bf16.msra.mxu0 0
    %377 = vmatprep.subr.bf16.mxu0 0
    %378 = vmatpush1.bf16.msra.mxu0 0
    %379 = vmatprep.subr.bf16.mxu0 0
    %380 = vmatpush1.bf16.msra.mxu0 0
    %381 = vmatprep.mubr.bf16.mxu0 0
    %382 = vmatmul.mubr.bf16.gmra.mrb[0].mxu0 %v347
    %v383 = vpop.f32.mrb[0].mxu0
    %v384 = vadd.f32 %v326, %v383
    %v385 = vpop.f32.mrb[0].mxu0
    %v386 = vpop.f32.mrb[0].mxu0
    %v387 = vpop.f32.mrb[0].mxu0
    %388 = vdwg.mxu0
    %v390 = vlaneseq
    %v391 = vshrl.u32 %v390, 7
    %v392 = vsub.s32 0, %v391
    %v393 = vrot.slane %v269, %v392
    %v395 = vadd.f32 %v384, %v393
    %v396 = vxor.u32 %v395, 2147483648
    %v397 = vmul.f32 %v396, 1.442695
    %v398 = vpow.pop %v397
    %v399 = vadd.f32 %v398, 1.0
    %v400 = vrcp.pop %v399
    %v401 = vmul.f32 1.0, %v400
    %v402 = vtanh.pop %v395
    %404 = vrot.lane.b32.xlu0 %v273, 32
    %v405 = vpop.permute.xlu0 %404
    %v407 = vmul.f32 %v401, %v405
    %409 = vrot.lane.b32.xlu0 %v402, 64
    %v410 = vpop.permute.xlu0 %409
    %v412 = vmul.f32 %v401, %v410
    %414 = vrot.lane.b32.xlu0 %v412, 32
    %v415 = vpop.permute.xlu0 %414
    %v417 = vadd.f32 %v407, %v415
    %v418 = vtanh.pop %v417
    %420 = vrot.lane.b32.xlu0 %v418, 64
    %v421 = vpop.permute.xlu0 %420
    %v423 = vmul.f32 %v401, %v421
    %425 = vrot.lane.b32.xlu0 %v423, 32
    %v426 = vpop.permute.xlu0 %425
    %s428 = scalar_lea.vmem [#allocation11], 8
    %429 = vst.msk [vmem:[%s428] sm:$0xff] %vm117, %v426
    %431 = vrot.lane.b32.xlu0 %v417, 96
    %v432 = vpop.permute.xlu0 %431
    %s434 = scalar_lea.vmem [#allocation13], 8
    %435 = vst.msk [vmem:[%s434] sm:$0xff] %vm117, %v432
    %v436 = vpack.c.bf16 %v423, %v423
    %v437 = vld [vmem:[#allocation7] sm:$0xf]
    %v438 = vld [vmem:[#allocation7 + $0x4] sm:$0xf]
    %v439 = vld [vmem:[#allocation7 + $0x8] sm:$0xf]
    %v440 = vld [vmem:[#allocation7 + $0xc] sm:$0xf]
    %v441 = vld [vmem:[#allocation8] sm:$0x1]
    %v443 = vlaneseq
    %v444 = vshrl.u32 %v443, 7
    %v445 = vsub.s32 0, %v444
    %v446 = vrot.slane %v441, %v445
    %449 = vrot.lane.b32.xlu0 %v436, 32
    %v450 = vpop.permute.xlu0 %449
    %v455 = vunpack.c.l.b16 %v437
    %v456 = vunpack.c.l.b16 %v438
    %v457 = vunpack.c.l.b16 %v439
    %v458 = vunpack.c.l.b16 %v440
    %v459 = vpack.c.b16 %v456, %v455
    %v460 = vpack.c.b16 %v458, %v457
    %v464 = vsel %vm117, %v450, 0
    %466 = vmatprep.subr.bf16.mxu0 0
    %467 = vmatpush1.bf16.msra.mxu0 %v459
    %468 = vmatprep.subr.bf16.mxu0 0
    %469 = vmatpush1.bf16.msra.mxu0 %v460
    %470 = vmatprep.subr.bf16.mxu0 0
    %471 = vmatpush1.bf16.msra.mxu0 0
    %472 = vmatprep.subr.bf16.mxu0 0
    %473 = vmatpush1.bf16.msra.mxu0 0
    %474 = vmatprep.subr.bf16.mxu0 0
    %475 = vmatpush1.bf16.msra.mxu0 0
    %476 = vmatprep.subr.bf16.mxu0 0
    %477 = vmatpush1.bf16.msra.mxu0 0
    %478 = vmatprep.subr.bf16.mxu0 0
    %479 = vmatpush1.bf16.msra.mxu0 0
    %480 = vmatprep.subr.bf16.mxu0 0
    %481 = vmatpush1.bf16.msra.mxu0 0
    %482 = vmatprep.subr.bf16.mxu0 0
    %483 = vmatpush1.bf16.msra.mxu0 0
    %484 = vmatprep.subr.bf16.mxu0 0
    %485 = vmatpush1.bf16.msra.mxu0 0
    %486 = vmatprep.subr.bf16.mxu0 0
    %487 = vmatpush1.bf16.msra.mxu0 0
    %488 = vmatprep.subr.bf16.mxu0 0
    %489 = vmatpush1.bf16.msra.mxu0 0
    %490 = vmatprep.subr.bf16.mxu0 0
    %491 = vmatpush1.bf16.msra.mxu0 0
    %492 = vmatprep.subr.bf16.mxu0 0
    %493 = vmatpush1.bf16.msra.mxu0 0
    %494 = vmatprep.subr.bf16.mxu0 0
    %495 = vmatpush1.bf16.msra.mxu0 0
    %496 = vmatprep.subr.bf16.mxu0 0
    %497 = vmatpush1.bf16.msra.mxu0 0
    %498 = vmatprep.mubr.bf16.mxu0 0
    %499 = vmatmul.mubr.bf16.gmra.mrb[0].mxu0 %v464
    %v500 = vpop.f32.mrb[0].mxu0
    %v501 = vadd.f32 %v446, %v500
    %v502 = vpop.f32.mrb[0].mxu0
    %v503 = vpop.f32.mrb[0].mxu0
    %v504 = vpop.f32.mrb[0].mxu0
    %505 = vdwg.mxu0
    %506 = vst.msk [vmem:[#allocation10] sm:$0xff] %vm117, %v501
    // Predicated region
    $region54: #{tpu_custom_call.1} parent=1 // pred_check
      _
    $region55: #{tpu_custom_call.1} parent=1 // pred_check_branch
      %508 = sbr.rel (0) target = $region57
    $region56: #{tpu_custom_call.1} parent=1 // pred_region
      %s510 = ssub.s32 128, 128
      %511 = vsyncadd [#allocation4], %s510
      %s513 = sshll.u32 [#allocation10], 4
      %s514 = int_to_ptr.vmem [resolvable:$true] %s513
      %516 = dma.vmem_to_hbm [thread:$0]  %s514, 128, %s9, [#allocation4]
    $region57: #{tpu_custom_call.1} parent=1 // pred_fallthru
      _
    // Predicated region
    $region58: #{tpu_custom_call.1} parent=1 // pred_check
      _
    $region59: #{tpu_custom_call.1} parent=1 // pred_check_branch
      %518 = sbr.rel (0) target = $region61
    $region60: #{tpu_custom_call.1} parent=1 // pred_region
      %s520 = ssub.s32 256, 256
      %521 = vsyncadd [#allocation12], %s520
      %s522 = sshll.u32 [#allocation11], 4
      %s523 = int_to_ptr.vmem [resolvable:$true] %s522
      %528 = dma.vmem_to_hbm [thread:$0]  %s523, 256, %s10, [#allocation12], 128, 128, 8
    $region61: #{tpu_custom_call.1} parent=1 // pred_fallthru
      _
    // Predicated region
    $region62: #{tpu_custom_call.1} parent=1 // pred_check
      _
    $region63: #{tpu_custom_call.1} parent=1 // pred_check_branch
      %530 = sbr.rel (0) target = $region65
    $region64: #{tpu_custom_call.1} parent=1 // pred_region
      %s532 = ssub.s32 256, 256
      %533 = vsyncadd [#allocation12], %s532
      %s534 = sshll.u32 [#allocation13], 4
      %s535 = int_to_ptr.vmem [resolvable:$true] %s534
      %540 = dma.vmem_to_hbm [thread:$0]  %s535, 256, %s11, [#allocation12], 128, 128, 8
    $region65: #{tpu_custom_call.1} parent=1 // pred_fallthru
      _
    // Predicated region
    $region66: #{tpu_custom_call.1} parent=1 // pred_check
      _
    $region67: #{tpu_custom_call.1} parent=1 // pred_check_branch
      %542 = sbr.rel (0) target = $region69
    $region68: #{tpu_custom_call.1} parent=1 // pred_region
      %543 = dma.done [#allocation4], 128
    $region69: #{tpu_custom_call.1} parent=1 // pred_fallthru
      _
    // Predicated region
    $region70: #{tpu_custom_call.1} parent=1 // pred_check
      _
    $region71: #{tpu_custom_call.1} parent=1 // pred_check_branch
      %545 = sbr.rel (0) target = $region73
    $region72: #{tpu_custom_call.1} parent=1 // pred_region
      %546 = dma.done [#allocation12], 256
    $region73: #{tpu_custom_call.1} parent=1 // pred_fallthru
      _
    // Predicated region
    $region74: #{tpu_custom_call.1} parent=1 // pred_check
      _
    $region75: #{tpu_custom_call.1} parent=1 // pred_check_branch
      %548 = sbr.rel (0) target = $region77
    $region76: #{tpu_custom_call.1} parent=1 // pred_region
      %549 = dma.done [#allocation12], 256
    $region77: #{tpu_custom_call.1} parent=1 // pred_fallthru
      _
    %550 = vsyncpa [#allocation3], 1
    %551 = vsyncpa [#allocation6], 1
    %552 = vsyncpa [#allocation9], 1
    %553 = vsyncpa [#allocation4], 1
    %554 = vsyncpa [#allocation12], 1

</llo_original>
